<compile_context>
chip_gen: v5e
topology: v5e:2x2
jax: 0.10.0
libtpu: 0.0.40
codegen_flags: <defaults>
</compile_context>

<pallas_src>
import jax
import jax.numpy as jnp
from jax.experimental import pallas as pl
from jax.experimental.pallas import tpu as pltpu


# --------------------------------------------------------------------------
# Helpers
# --------------------------------------------------------------------------
def _round_up(x, m):
    return ((x + m - 1) // m) * m


def _cdiv(a, b):
    return -(-a // b)


def _vmem_capacity_bytes():
    """Physical VMEM per TensorCore; conservative fallback = v7x's 64 MiB."""
    try:
        info = pltpu.get_tpu_info()
        cap = getattr(info, "vmem_capacity_bytes", None)
        if cap:
            return int(cap)
    except Exception:
        pass
    return 64 * 1024 * 1024


# --------------------------------------------------------------------------
# Pallas kernel: (tm, D) @ (D, tn) + bias(1, tn)
# --------------------------------------------------------------------------
def _proj_kernel(p_ref, w_ref, b_ref, o_ref):
    acc = jnp.dot(p_ref[...], w_ref[...], preferred_element_type=jnp.float32)
    o_ref[...] = (acc + b_ref[...]).astype(o_ref.dtype)


def _pick_tiles(M, D, E_pad, in_isz, out_isz, desired_tm, desired_tn, budget):
    """Choose 128-aligned (tm, tn) tiles that fit the VMEM budget.

    tn = weight/output column tile, tm = patch row tile. Weight + bias are
    single-buffered when E_pad fits in one tile (constant index_map), else
    double-buffered.
    """
    # --- N (embedding) tile: largest 128-multiple whose weight block takes
    #     at most ~1/3 of the budget, leaving room for patch/output tiles.
    max_w_bytes = max(budget // 3, 512 * 1024)

    def weight_bytes(tn_):
        nbuf = 1 if tn_ >= E_pad else 2          # constant index -> 1 buffer
        return nbuf * (D * tn_ * in_isz + tn_ * 4)  # weight + f32 bias

    tn = min(E_pad, max(_round_up(desired_tn, 128), 128))
    while tn > 128 and weight_bytes(tn) > max_w_bytes:
        tn -= 128
    tn = max(128, tn)
    num_n = _cdiv(E_pad, tn)
    w_fixed = weight_bytes(tn)
    # TODO(synk): if even a (D, 128) weight block exceeds the budget (huge
    # tubelet_dim), add a K grid axis with an f32 VMEM accumulator.

    # --- M (row) tile: fill the remaining budget; cap so there are >= ~4
    #     grid steps (v7x's two TensorCores both get work, pipeline overlaps).
    per_row = 2 * D * in_isz + 2 * tn * out_isz       # double-buffered in/out
    tm_cap = max(128, ((budget - w_fixed) // per_row) // 128 * 128)
    m_tiles_wanted = max(1, _cdiv(4, num_n))
    tm_steps_cap = _round_up(_cdiv(M, m_tiles_wanted), 128)
    tm = min(desired_tm, tm_cap, _round_up(M, 128), tm_steps_cap)
    tm = max(128, (tm // 128) * 128)
    return tm, tn, num_n


def linear_proj_pallas(patches_2d, weight, bias, *, tm=512, tn=512,
                       compute_dtype=jnp.bfloat16, vmem_budget_bytes=None):
    """patches_2d: (M, D); weight: (D, E); bias: (E,) -> (M, E).

    - operands optionally cast to compute_dtype (accumulation stays f32),
    - E zero-padded to a 128 multiple for lane-dense stores (sliced off),
    - M is NOT padded: grid is cdiv(M, tm) and Pallas masks the ragged tile.
    """
    M, D = patches_2d.shape
    E = weight.shape[1]
    out_dtype = patches_2d.dtype

    if compute_dtype is not None:
        patches_2d = patches_2d.astype(compute_dtype)
        weight = weight.astype(compute_dtype)
    bias = bias.astype(jnp.float32)

    # Lane-dense output: pad E up to a multiple of 128 (cheap, weight-sized).
    E_pad = _round_up(E, 128)
    if E_pad != E:
        weight = jnp.pad(weight, ((0, 0), (0, E_pad - E)))
        bias = jnp.pad(bias, ((0, E_pad - E),))
    bias_2d = bias.reshape(1, E_pad)

    in_isz = jnp.dtype(patches_2d.dtype).itemsize
    out_isz = jnp.dtype(out_dtype).itemsize

    vmem_cap = _vmem_capacity_bytes()
    if vmem_budget_bytes is None:
        vmem_budget_bytes = int(vmem_cap * 0.70)
    vmem_limit = min(int(vmem_cap * 0.90), int(vmem_budget_bytes * 1.3))

    tm_eff, tn_eff, num_n = _pick_tiles(M, D, E_pad, in_isz, out_isz,
                                        tm, tn, vmem_budget_bytes)
    num_m = _cdiv(M, tm_eff)

    # Single-buffer weight/bias when their block index never changes.
    const_mode = pl.Buffered(1) if num_n == 1 else None

    cost = pl.CostEstimate(
        flops=2 * M * D * E_pad,
        transcendentals=0,
        bytes_accessed=(M * D * in_isz + D * E_pad * in_isz
                        + E_pad * 4 + M * E_pad * out_isz),
    )

    out = pl.pallas_call(
        _proj_kernel,
        out_shape=jax.ShapeDtypeStruct((M, E_pad), out_dtype),
        grid_spec=pltpu.PrefetchScalarGridSpec(
            num_scalar_prefetch=0,
            grid=(num_m, num_n),
            in_specs=[
                pl.BlockSpec((tm_eff, D), lambda i, j: (i, 0)),   # patch rows
                pl.BlockSpec((D, tn_eff), lambda i, j: (0, j),    # weight cols
                             pipeline_mode=const_mode),
                pl.BlockSpec((1, tn_eff), lambda i, j: (0, j),    # bias cols
                             pipeline_mode=const_mode),
            ],
            out_specs=pl.BlockSpec((tm_eff, tn_eff), lambda i, j: (i, j)),
        ),
        compiler_params=pltpu.CompilerParams(
            dimension_semantics=("parallel", "parallel"),
            vmem_limit_bytes=vmem_limit,
        ),
        cost_estimate=cost,
    )(patches_2d, weight, bias_2d)

    return out[:, :E] if E_pad != E else out


# --------------------------------------------------------------------------
# Cuboids module (JAX glue + Pallas projection)
# --------------------------------------------------------------------------
def cuboids_rearrange(x, pt, ph, pw):
    """'b c (t pt) (h ph) (w pw) -> b (t h w) (pt ph pw c)'"""
    b, c, T, H, W = x.shape
    t, h, w = T // pt, H // ph, W // pw
    x = x.reshape(b, c, t, pt, h, ph, w, pw)
    x = jnp.transpose(x, (0, 2, 4, 6, 3, 5, 7, 1))   # (b,t,h,w,pt,ph,pw,c)
    return x.reshape(b, t * h * w, pt * ph * pw * c)


def init_cuboids_params(key, embedding_dim, tubelet_t, tubelet_h, tubelet_w,
                        in_channels, dtype=jnp.float32):
    tubelet_dim = in_channels * tubelet_h * tubelet_w * tubelet_t
    kw, kb = jax.random.split(key)
    bound = 1.0 / jnp.sqrt(tubelet_dim)
    # Stored as (D, E) so the kernel computes patches @ W (== x @ W_torch.T).
    weight = jax.random.uniform(kw, (tubelet_dim, embedding_dim),
                                minval=-bound, maxval=bound, dtype=dtype)
    bias = jax.random.uniform(kb, (embedding_dim,),
                              minval=-bound, maxval=bound, dtype=dtype)
    return {"weight": weight, "bias": bias}


def cuboids_forward(params, x, tubelet_t, tubelet_h, tubelet_w,
                    return_embeds=False, compute_dtype=jnp.bfloat16):
    # TODO(synk): fuse the tubelet gather (rearrange) into the kernel via a
    # (b,t,h,w) grid over a pl.ANY HBM input + strided DMA if the transpose
    # shows up HBM-bound; callers needing only embeddings should pass
    # return_embeds=True so `patches` never has to be materialized for return.
    patches = cuboids_rearrange(x, tubelet_t, tubelet_h, tubelet_w)  # (B,N,D)
    B, N, D = patches.shape
    E = params["weight"].shape[1]

    emb_2d = linear_proj_pallas(patches.reshape(B * N, D),
                                params["weight"], params["bias"],
                                compute_dtype=compute_dtype)
    embeddings = emb_2d.reshape(B, N, E)

    if return_embeds:
        return embeddings
    return (patches, embeddings)


# --------------------------------------------------------------------------
if __name__ == "__main__":
    # Small shapes consistent with the module:
    #   in_channels=4, T=4, H=16, W=16, tubelets (2,4,4)
    #   tubelet_dim = 4*4*4*2 = 128, embedding_dim = 32
    B, C, T, H, W = 2, 4, 4, 16, 16
    tubelet_t, tubelet_h, tubelet_w = 2, 4, 4
    embedding_dim = 32

    key = jax.random.PRNGKey(0)
    kx, kp = jax.random.split(key)
    x = jax.random.normal(kx, (B, C, T, H, W), dtype=jnp.float32)
    params = init_cuboids_params(kp, embedding_dim, tubelet_t, tubelet_h,
                                 tubelet_w, C)

    N = (T // tubelet_t) * (H // tubelet_h) * (W // tubelet_w)
    patches_ref = cuboids_rearrange(x, tubelet_t, tubelet_h, tubelet_w)
    ref = patches_ref @ params["weight"] + params["bias"]

    # Default path: bf16 operands, f32 accumulation (recommended on all gens).
    patches, embeddings = cuboids_forward(params, x, tubelet_t, tubelet_h,
                                          tubelet_w)
    jax.block_until_ready(embeddings)
    assert patches.shape == (B, N, tubelet_t * tubelet_h * tubelet_w * C)
    assert embeddings.shape == (B, N, embedding_dim)
    assert jnp.allclose(patches, patches_ref)
    assert jnp.allclose(embeddings, ref, atol=5e-2, rtol=5e-2)

    # Exact-f32 path (matches PyTorch nn.Linear semantics to tight tolerance).
    emb_f32 = cuboids_forward(params, x, tubelet_t, tubelet_h, tubelet_w,
                              return_embeds=True, compute_dtype=None)
    jax.block_until_ready(emb_f32)
    assert emb_f32.shape == (B, N, embedding_dim)
    assert jnp.allclose(emb_f32, ref, atol=1e-5, rtol=1e-5)

    print("KERNEL_OK")
</pallas_src>

<mosaic_0001>
module attributes {stable_mosaic.version = 11 : i64} {
  func.func @_proj_kernel(%arg0: i32, %arg1: i32, %arg2: memref<128x128xbf16, #tpu.memory_space<vmem>>, %arg3: memref<128x128xbf16, #tpu.memory_space<vmem>>, %arg4: memref<1x128xf32, #tpu.memory_space<vmem>>, %arg5: memref<128x128xf32, #tpu.memory_space<vmem>>) attributes {dimension_semantics = [#tpu.dimension_semantics<parallel>, #tpu.dimension_semantics<parallel>], iteration_bounds = array<i64: 1, 1>, scalar_prefetch = 0 : i64, scratch_operands = 0 : i64, tpu.core_type = #tpu.core_type<tc>, window_params = [{transform_indices = @transform_0, window_bounds = array<i64: 128, 128>}, {pipeline_mode = #tpu.pipeline_mode<synchronous>, transform_indices = @transform_1, window_bounds = array<i64: 128, 128>}, {pipeline_mode = #tpu.pipeline_mode<synchronous>, transform_indices = @transform_2, window_bounds = array<i64: 1, 128>}, {transform_indices = @transform_3, window_bounds = array<i64: 128, 128>}]} {
    %c0 = arith.constant 0 : index
    %c0_0 = arith.constant 0 : index
    %0 = vector.load %arg2[%c0, %c0_0] : memref<128x128xbf16, #tpu.memory_space<vmem>>, vector<128x128xbf16>
    %c0_1 = arith.constant 0 : index
    %c0_2 = arith.constant 0 : index
    %1 = vector.load %arg3[%c0_1, %c0_2] : memref<128x128xbf16, #tpu.memory_space<vmem>>, vector<128x128xbf16>
    %cst = arith.constant dense<0.000000e+00> : vector<128x128xf32>
    %2 = tpu.matmul %0, %1, %cst {dimension_numbers = #tpu.dot_dimension_numbers<[1], [0], [0], [1], [0, 0, 1, 1], [], []>} : vector<128x128xbf16>, vector<128x128xbf16>, vector<128x128xf32> -> vector<128x128xf32>
    %c0_3 = arith.constant 0 : index
    %c0_4 = arith.constant 0 : index
    %3 = vector.load %arg4[%c0_3, %c0_4] : memref<1x128xf32, #tpu.memory_space<vmem>>, vector<1x128xf32>
    %4 = vector.broadcast %3 : vector<1x128xf32> to vector<128x128xf32>
    %5 = arith.addf %2, %4 : vector<128x128xf32>
    %c0_5 = arith.constant 0 : index
    %c0_6 = arith.constant 0 : index
    %6 = vector.load %arg5[%c0_5, %c0_6] : memref<128x128xf32, #tpu.memory_space<vmem>>, vector<128x128xf32>
    tpu.vector_store %arg5[%c0_5, %c0_6], %5 {strides = array<i32>} : memref<128x128xf32, #tpu.memory_space<vmem>>, vector<128x128xf32>,
    return
  }
  func.func @transform_0(%arg0: i32, %arg1: i32) -> (i32, i32) {
    %c0_i32 = arith.constant 0 : i32
    %c0_i32_0 = arith.constant 0 : i32
    return %arg0, %c0_i32 : i32, i32
  }
  func.func @transform_1(%arg0: i32, %arg1: i32) -> (i32, i32) {
    %c0_i32 = arith.constant 0 : i32
    %c0_i32_0 = arith.constant 0 : i32
    return %c0_i32, %arg1 : i32, i32
  }
  func.func @transform_2(%arg0: i32, %arg1: i32) -> (i32, i32) {
    %c0_i32 = arith.constant 0 : i32
    %c0_i32_0 = arith.constant 0 : i32
    return %c0_i32, %arg1 : i32, i32
  }
  func.func @transform_3(%arg0: i32, %arg1: i32) -> (i32, i32) {
    %c0_i32 = arith.constant 0 : i32
    return %arg0, %arg1 : i32, i32
  }
}

</mosaic_0001>

<llo_original>
// kernel: tpu_custom_call.1
$region0: #{tpu_custom_call.1}
  #allocation0 [shape = 'u32[]', space=smem, size = 0x4, offset = 0x4, fixed_abs, tag = 'smem constant byte address 0x4 - core index']
  #allocation1 [shape = 'u32[72,128]{1,0:T(1,128)}', space=vmem, size = 0x9000, scoped, tag = 'internal scratch']
  %s0 = inlined_call_operand.hbm [shape: bf16[64,128], index: 0, kind: input, shape index: {}]
  %s1 = inlined_call_operand.hbm [shape: bf16[128,128], index: 1, kind: input, shape index: {}]
  %s2 = inlined_call_operand.vmem [shape: f32[1,128], index: 2, kind: input, shape index: {}]
  %s3 = inlined_call_operand.hbm [shape: f32[64,128], index: 3, kind: output, shape index: {}]
  %s4 = sld [smem:[#allocation0]]
  $region30: #{tpu_custom_call.1} parent=0
    _
  %s6 = ssub.s32 1, %s4
  %s7 = scalar_select 0, %s6, %s4
  $region1: #{tpu_custom_call.1} parent=0
    #allocation2 [shape = 'u8[32768]{0}', space=vmem, size = 0x8000, scoped, tag = 'input window, operand 0, single buffered']
    #allocation3 [shape = 's32[1]{0}', space=sflag, size = 0x4, scoped, tag = 'scoped memory for tpu_custom_call.1']
    #allocation4 [shape = 's32[1]{0}', space=sflag, size = 0x4, scoped, tag = 'scoped memory for tpu_custom_call.1']
    #allocation5 [shape = 'u8[32768]{0}', space=vmem, size = 0x8000, scoped, tag = 'input window, operand 1, single buffered']
    #allocation6 [shape = 's32[1]{0}', space=sflag, size = 0x4, scoped, tag = 'scoped memory for tpu_custom_call.1']
    #allocation7 [shape = 'u8[65536]{0}', space=vmem, size = 0x10000, scoped, tag = 'output window, operand 0, single buffered']
    %8 = vsyncpa [#allocation3], 0
    %9 = vsyncpa [#allocation6], 0
    %10 = vsyncpa [#allocation4], 0
    // Predicated region
    $region2: #{tpu_custom_call.1} parent=1 // pred_check
      _
    $region3: #{tpu_custom_call.1} parent=1 // pred_check_branch
      %12 = sbr.rel (0) target = $region5
    $region4: #{tpu_custom_call.1} parent=1 // pred_region
      %14 = vsyncadd [#allocation3], 512
      %s15 = sshll.u32 %s0, 4
      %s16 = int_to_ptr.hbm [resolvable:$true] %s15
      %s17 = sshll.u32 [#allocation2], 4
      %s18 = int_to_ptr.vmem [resolvable:$true] %s17
      %23 = dma.hbm_to_vmem [thread:$0]  %s16, 512, %s18, [#allocation3], 64, 64, 4
    $region5: #{tpu_custom_call.1} parent=1 // pred_fallthru
      _
    // Predicated region
    $region6: #{tpu_custom_call.1} parent=1 // pred_check
      _
    $region7: #{tpu_custom_call.1} parent=1 // pred_check_branch
      %25 = sbr.rel (0) target = $region9
    $region8: #{tpu_custom_call.1} parent=1 // pred_region
      %27 = vsyncadd [#allocation6], 0
      %s28 = sshll.u32 %s1, 4
      %s29 = int_to_ptr.hbm [resolvable:$true] %s28
      %s30 = sshll.u32 [#allocation5], 4
      %s31 = int_to_ptr.vmem [resolvable:$true] %s30
      %36 = dma.hbm_to_vmem [thread:$0]  %s29, 1024, %s31, [#allocation6], 64, 64, 4
    $region9: #{tpu_custom_call.1} parent=1 // pred_fallthru
      _
    // Predicated region
    $region10: #{tpu_custom_call.1} parent=1 // pred_check
      _
    $region11: #{tpu_custom_call.1} parent=1 // pred_check_branch
      %38 = sbr.rel (0) target = $region13
    $region12: #{tpu_custom_call.1} parent=1 // pred_region
      _
    $region13: #{tpu_custom_call.1} parent=1 // pred_fallthru
      _
    // Predicated region
    $region14: #{tpu_custom_call.1} parent=1 // pred_check
      _
    $region15: #{tpu_custom_call.1} parent=1 // pred_check_branch
      %40 = sbr.rel (0) target = $region17
    $region16: #{tpu_custom_call.1} parent=1 // pred_region
      %42 = dma.done [#allocation3], 1024
    $region17: #{tpu_custom_call.1} parent=1 // pred_fallthru
      _
    // Predicated region
    $region18: #{tpu_custom_call.1} parent=1 // pred_check
      _
    $region19: #{tpu_custom_call.1} parent=1 // pred_check_branch
      %44 = sbr.rel (0) target = $region21
    $region20: #{tpu_custom_call.1} parent=1 // pred_region
      %46 = dma.done [#allocation6], 1024
    $region21: #{tpu_custom_call.1} parent=1 // pred_fallthru
      _
    %v47 = vld [vmem:[#allocation2] sm:$0xf]
    %v48 = vld [vmem:[#allocation2 + $0x4] sm:$0xf]
    %v49 = vld [vmem:[#allocation2 + $0x8] sm:$0xf]
    %v50 = vld [vmem:[#allocation2 + $0xc] sm:$0xf]
    %v51 = vld [vmem:[#allocation2 + $0x10] sm:$0xf]
    %v52 = vld [vmem:[#allocation2 + $0x14] sm:$0xf]
    %v53 = vld [vmem:[#allocation2 + $0x18] sm:$0xf]
    %v54 = vld [vmem:[#allocation2 + $0x1c] sm:$0xf]
    %v55 = vld [vmem:[#allocation2 + $0x20] sm:$0xf]
    %v56 = vld [vmem:[#allocation2 + $0x24] sm:$0xf]
    %v57 = vld [vmem:[#allocation2 + $0x28] sm:$0xf]
    %v58 = vld [vmem:[#allocation2 + $0x2c] sm:$0xf]
    %v59 = vld [vmem:[#allocation2 + $0x30] sm:$0xf]
    %v60 = vld [vmem:[#allocation2 + $0x34] sm:$0xf]
    %v61 = vld [vmem:[#allocation2 + $0x38] sm:$0xf]
    %v62 = vld [vmem:[#allocation2 + $0x3c] sm:$0xf]
    %v63 = vld [vmem:[#allocation5] sm:$0xf]
    %v64 = vld [vmem:[#allocation5 + $0x4] sm:$0xf]
    %v65 = vld [vmem:[#allocation5 + $0x8] sm:$0xf]
    %v66 = vld [vmem:[#allocation5 + $0xc] sm:$0xf]
    %v67 = vld [vmem:[#allocation5 + $0x10] sm:$0xf]
    %v68 = vld [vmem:[#allocation5 + $0x14] sm:$0xf]
    %v69 = vld [vmem:[#allocation5 + $0x18] sm:$0xf]
    %v70 = vld [vmem:[#allocation5 + $0x1c] sm:$0xf]
    %v71 = vld [vmem:[#allocation5 + $0x20] sm:$0xf]
    %v72 = vld [vmem:[#allocation5 + $0x24] sm:$0xf]
    %v73 = vld [vmem:[#allocation5 + $0x28] sm:$0xf]
    %v74 = vld [vmem:[#allocation5 + $0x2c] sm:$0xf]
    %v75 = vld [vmem:[#allocation5 + $0x30] sm:$0xf]
    %v76 = vld [vmem:[#allocation5 + $0x34] sm:$0xf]
    %v77 = vld [vmem:[#allocation5 + $0x38] sm:$0xf]
    %v78 = vld [vmem:[#allocation5 + $0x3c] sm:$0xf]
    %v79 = vld [vmem:[%s2] sm:$0x1]
    %v81 = vperm.slane %v79, 0
    %v99 = vunpack.c.l.b16 %v47
    %v100 = vunpack.c.l.b16 %v48
    %v101 = vunpack.c.l.b16 %v49
    %v102 = vunpack.c.l.b16 %v50
    %v103 = vunpack.c.l.b16 %v51
    %v104 = vunpack.c.l.b16 %v52
    %v105 = vunpack.c.l.b16 %v53
    %v106 = vunpack.c.l.b16 %v54
    %v107 = vunpack.c.l.b16 %v55
    %v108 = vunpack.c.l.b16 %v56
    %v109 = vunpack.c.l.b16 %v57
    %v110 = vunpack.c.l.b16 %v58
    %v111 = vunpack.c.l.b16 %v59
    %v112 = vunpack.c.l.b16 %v60
    %v113 = vunpack.c.l.b16 %v61
    %v114 = vunpack.c.l.b16 %v62
    %v115 = vpack.c.b16 %v100, %v99
    %v116 = vpack.c.b16 %v102, %v101
    %v117 = vpack.c.b16 %v104, %v103
    %v118 = vpack.c.b16 %v106, %v105
    %v119 = vpack.c.b16 %v108, %v107
    %v120 = vpack.c.b16 %v110, %v109
    %v121 = vpack.c.b16 %v112, %v111
    %v122 = vpack.c.b16 %v114, %v113
    %v147 = vunpack.c.l.b16 %v63
    %v148 = vunpack.c.l.b16 %v64
    %v149 = vunpack.c.l.b16 %v65
    %v150 = vunpack.c.l.b16 %v66
    %v151 = vunpack.c.l.b16 %v67
    %v152 = vunpack.c.l.b16 %v68
    %v153 = vunpack.c.l.b16 %v69
    %v154 = vunpack.c.l.b16 %v70
    %v155 = vunpack.c.l.b16 %v71
    %v156 = vunpack.c.l.b16 %v72
    %v157 = vunpack.c.l.b16 %v73
    %v158 = vunpack.c.l.b16 %v74
    %v159 = vunpack.c.l.b16 %v75
    %v160 = vunpack.c.l.b16 %v76
    %v161 = vunpack.c.l.b16 %v77
    %v162 = vunpack.c.l.b16 %v78
    %v163 = vpack.c.b16 %v148, %v147
    %v164 = vpack.c.b16 %v150, %v149
    %v165 = vpack.c.b16 %v152, %v151
    %v166 = vpack.c.b16 %v154, %v153
    %v167 = vpack.c.b16 %v156, %v155
    %v168 = vpack.c.b16 %v158, %v157
    %v169 = vpack.c.b16 %v160, %v159
    %v170 = vpack.c.b16 %v162, %v161
    %179 = vmatpush.bf16.msra.mxu0 %v170
    %180 = vmatpush.bf16.msra.mxu0 %v169
    %181 = vmatpush.bf16.msra.mxu0 %v168
    %182 = vmatpush.bf16.msra.mxu0 %v167
    %183 = vmatpush.bf16.msra.mxu0 %v166
    %184 = vmatpush.bf16.msra.mxu0 %v165
    %185 = vmatpush.bf16.msra.mxu0 %v164
    %186 = vmatpush.bf16.msra.mxu0 %v163
    %187 = vmatmul.bf16.gmra.mxu0 %v115
    %v188 = vpop.f32.mrf.mxu0
    %v189 = vadd.f32 %v81, %v188
    %v190 = vpop.f32.mrf.mxu0
    %v191 = vadd.f32 %v81, %v190
    %192 = vmatmul.bf16.gmra.mxu0 %v116
    %v193 = vpop.f32.mrf.mxu0
    %v194 = vadd.f32 %v81, %v193
    %v195 = vpop.f32.mrf.mxu0
    %v196 = vadd.f32 %v81, %v195
    %197 = vmatmul.bf16.gmra.mxu0 %v117
    %v198 = vpop.f32.mrf.mxu0
    %v199 = vadd.f32 %v81, %v198
    %v200 = vpop.f32.mrf.mxu0
    %v201 = vadd.f32 %v81, %v200
    %202 = vmatmul.bf16.gmra.mxu0 %v118
    %v203 = vpop.f32.mrf.mxu0
    %v204 = vadd.f32 %v81, %v203
    %v205 = vpop.f32.mrf.mxu0
    %v206 = vadd.f32 %v81, %v205
    %207 = vmatmul.bf16.gmra.mxu0 %v119
    %v208 = vpop.f32.mrf.mxu0
    %v209 = vadd.f32 %v81, %v208
    %v210 = vpop.f32.mrf.mxu0
    %v211 = vadd.f32 %v81, %v210
    %212 = vmatmul.bf16.gmra.mxu0 %v120
    %v213 = vpop.f32.mrf.mxu0
    %v214 = vadd.f32 %v81, %v213
    %v215 = vpop.f32.mrf.mxu0
    %v216 = vadd.f32 %v81, %v215
    %217 = vmatmul.bf16.gmra.mxu0 %v121
    %v218 = vpop.f32.mrf.mxu0
    %v219 = vadd.f32 %v81, %v218
    %v220 = vpop.f32.mrf.mxu0
    %v221 = vadd.f32 %v81, %v220
    %222 = vmatmul.bf16.gmra.mxu0 %v122
    %v223 = vpop.f32.mrf.mxu0
    %v224 = vadd.f32 %v81, %v223
    %v225 = vpop.f32.mrf.mxu0
    %v226 = vadd.f32 %v81, %v225
    %227 = vdwg.mxu0
    %228 = vst [vmem:[#allocation7] sm:$0xff] %v189
    %229 = vst [vmem:[#allocation7 + $0x8] sm:$0xff] %v191
    %230 = vst [vmem:[#allocation7 + $0x10] sm:$0xff] %v194
    %231 = vst [vmem:[#allocation7 + $0x18] sm:$0xff] %v196
    %232 = vst [vmem:[#allocation7 + $0x20] sm:$0xff] %v199
    %233 = vst [vmem:[#allocation7 + $0x28] sm:$0xff] %v201
    %234 = vst [vmem:[#allocation7 + $0x30] sm:$0xff] %v204
    %235 = vst [vmem:[#allocation7 + $0x38] sm:$0xff] %v206
    %236 = vst [vmem:[#allocation7 + $0x40] sm:$0xff] %v209
    %237 = vst [vmem:[#allocation7 + $0x48] sm:$0xff] %v211
    %238 = vst [vmem:[#allocation7 + $0x50] sm:$0xff] %v214
    %239 = vst [vmem:[#allocation7 + $0x58] sm:$0xff] %v216
    %240 = vst [vmem:[#allocation7 + $0x60] sm:$0xff] %v219
    %241 = vst [vmem:[#allocation7 + $0x68] sm:$0xff] %v221
    %242 = vst [vmem:[#allocation7 + $0x70] sm:$0xff] %v224
    %243 = vst [vmem:[#allocation7 + $0x78] sm:$0xff] %v226
    // Predicated region
    $region22: #{tpu_custom_call.1} parent=1 // pred_check
      _
    $region23: #{tpu_custom_call.1} parent=1 // pred_check_branch
      %245 = sbr.rel (0) target = $region25
    $region24: #{tpu_custom_call.1} parent=1 // pred_region
      %247 = vsyncadd [#allocation4], 1024
      %s248 = sshll.u32 [#allocation7], 4
      %s249 = int_to_ptr.vmem [resolvable:$true] %s248
      %s250 = sshll.u32 %s3, 4
      %s251 = int_to_ptr.hbm [resolvable:$true] %s250
      %256 = dma.vmem_to_hbm [thread:$0]  %s249, 1024, %s251, [#allocation4], 128, 128, 8
    $region25: #{tpu_custom_call.1} parent=1 // pred_fallthru
      _
    // Predicated region
    $region26: #{tpu_custom_call.1} parent=1 // pred_check
      _
    $region27: #{tpu_custom_call.1} parent=1 // pred_check_branch
      %258 = sbr.rel (0) target = $region29
    $region28: #{tpu_custom_call.1} parent=1 // pred_region
      %260 = dma.done [#allocation4], 2048
    $region29: #{tpu_custom_call.1} parent=1 // pred_fallthru
      _
    %261 = vsyncpa [#allocation3], 1
    %262 = vsyncpa [#allocation6], 1
    %263 = vsyncpa [#allocation4], 1

</llo_original>
